<compile_context>
chip_gen: v5e
topology: v5e:2x2
jax: 0.10.0
libtpu: 0.0.40
codegen_flags: <defaults>
</compile_context>

<pallas_src>
import jax
import jax.numpy as jnp
from jax.experimental import pallas as pl
from jax.experimental.pallas import tpu as pltpu

_LANE = 128
_SUBLANE = 8


def _round_up(x, m):
    return ((x + m - 1) // m) * m


def ae_kernel(x_ref, we_ref, be_ref, wd_ref, bd_ref, wv_ref, bv_ref,
              h_ref, out_ref, vt_ref):
    x = x_ref[...]

    # encoder: Linear + ReLU (f32 accumulation on the MXU)
    h = jnp.dot(x, we_ref[...], preferred_element_type=jnp.float32) + be_ref[...]
    h = jnp.maximum(h, 0.0)
    h_ref[...] = h.astype(h_ref.dtype)

    # feed the second/third matmuls in the weights' (compute) dtype
    h_mm = h.astype(wd_ref.dtype)

    # decoder: Linear + ReLU
    out = jnp.dot(h_mm, wd_ref[...], preferred_element_type=jnp.float32) + bd_ref[...]
    out_ref[...] = jnp.maximum(out, 0.0).astype(out_ref.dtype)

    # verb_transformation: Linear + Tanh
    vt = jnp.dot(h_mm, wv_ref[...], preferred_element_type=jnp.float32) + bv_ref[...]
    vt_ref[...] = jnp.tanh(vt).astype(vt_ref.dtype)


def ae_forward(x, w_enc, b_enc, w_dec, b_dec, w_vt, b_vt,
               *, compute_dtype=jnp.float32, batch_tile=256):
    batch, input_size = x.shape
    hidden_size = w_enc.shape[1]
    output_size = w_vt.shape[1]

    # ---- lane-dense padded sizes -------------------------------------------
    in_p = _round_up(input_size, _LANE)
    hid_p = _round_up(hidden_size, _LANE)
    out_p = _round_up(output_size, _LANE)

    tb = min(batch_tile, _round_up(batch, _SUBLANE))
    batch_p = _round_up(batch, tb)
    grid = (batch_p // tb,)

    def pad2(a, rows, cols, dtype):
        return jnp.pad(a, ((0, rows - a.shape[0]), (0, cols - a.shape[1]))).astype(dtype)

    x_p = pad2(x, batch_p, in_p, compute_dtype)
    we_p = pad2(w_enc, input_size and x.shape[1], hid_p, compute_dtype) \
        if False else pad2(w_enc, in_p, hid_p, compute_dtype)
    wd_p = pad2(w_dec, hid_p, in_p, compute_dtype)
    wv_p = pad2(w_vt, hid_p, out_p, compute_dtype)
    be_p = pad2(b_enc, 1, hid_p, jnp.float32)
    bd_p = pad2(b_dec, 1, in_p, jnp.float32)
    bv_p = pad2(b_vt, 1, out_p, jnp.float32)

    # ---- block specs --------------------------------------------------------
    def row_spec(n):                    # batch-tiled activations / outputs
        return pl.BlockSpec((tb, n), lambda i: (i, 0))

    def resident_spec(shape):           # weights / biases: same block every step
        return pl.BlockSpec(shape, lambda i: (0, 0))

    # ---- cost estimate ------------------------------------------------------
    flops = 2 * batch_p * (in_p * hid_p + hid_p * in_p + hid_p * out_p)
    out_bytes = 4 * batch_p * (hid_p + in_p + out_p)
    bytes_accessed = (x_p.size * x_p.dtype.itemsize
                      + we_p.size * we_p.dtype.itemsize
                      + wd_p.size * wd_p.dtype.itemsize
                      + wv_p.size * wv_p.dtype.itemsize
                      + 4 * (hid_p + in_p + out_p)
                      + out_bytes)
    cost = pl.CostEstimate(flops=flops,
                           transcendentals=batch_p * out_p,
                           bytes_accessed=bytes_accessed)

    # ---- VMEM budget: raise the scoped limit only if needed -----------------
    itm = jnp.dtype(compute_dtype).itemsize
    weight_bytes = 2 * itm * (in_p * hid_p + hid_p * in_p + hid_p * out_p)  # double-buffered
    tile_bytes = 2 * (itm * tb * in_p + 4 * tb * (hid_p + in_p + out_p))    # in + 3 outs, 2 bufs
    vmem_needed = weight_bytes + tile_bytes + 2 * 4 * (hid_p + in_p + out_p)
    default_scoped = 32 * 1024 * 1024
    vmem_limit = None
    if vmem_needed > default_scoped:
        vmem_limit = min(int(vmem_needed * 1.25), 100 * 1024 * 1024)

    compiler_params = pltpu.CompilerParams(
        dimension_semantics=("parallel",),
        vmem_limit_bytes=vmem_limit,
    )

    h_p, out_p_arr, vt_p_arr = pl.pallas_call(
        ae_kernel,
        grid=grid,
        out_shape=(
            jax.ShapeDtypeStruct((batch_p, hid_p), jnp.float32),   # h
            jax.ShapeDtypeStruct((batch_p, in_p), jnp.float32),    # out
            jax.ShapeDtypeStruct((batch_p, out_p), jnp.float32),   # vt_out
        ),
        in_specs=[
            row_spec(in_p),
            resident_spec((in_p, hid_p)), resident_spec((1, hid_p)),
            resident_spec((hid_p, in_p)), resident_spec((1, in_p)),
            resident_spec((hid_p, out_p)), resident_spec((1, out_p)),
        ],
        out_specs=(
            row_spec(hid_p),
            row_spec(in_p),
            row_spec(out_p),
        ),
        compiler_params=compiler_params,
        cost_estimate=cost,
    )(x_p, we_p, be_p, wd_p, bd_p, wv_p, bv_p)

    # slice padded lanes / rows back off
    h = h_p[:batch, :hidden_size]
    out = out_p_arr[:batch, :input_size]
    vt = vt_p_arr[:batch, :output_size]
    return h, out, vt


def init_params(key, input_size, hidden_size, output_size):
    """Deterministic synthetic init (PyTorch Linear-style uniform bounds).
    Weights are stored pre-transposed as (in_features, out_features)."""
    ks = jax.random.split(key, 6)

    def linear(kw, kb, fan_in, fan_out):
        bound = 1.0 / (fan_in ** 0.5)
        w = jax.random.uniform(kw, (fan_in, fan_out), jnp.float32, -bound, bound)
        b = jax.random.uniform(kb, (1, fan_out), jnp.float32, -bound, bound)
        return w, b

    w_enc, b_enc = linear(ks[0], ks[1], input_size, hidden_size)
    w_dec, b_dec = linear(ks[2], ks[3], hidden_size, input_size)
    w_vt, b_vt = linear(ks[4], ks[5], hidden_size, output_size)
    return w_enc, b_enc, w_dec, b_dec, w_vt, b_vt


if __name__ == "__main__":
    input_size, hidden_size, output_size = 32, 64, 16
    batch = 8

    key = jax.random.PRNGKey(0)
    k_x, k_p = jax.random.split(key)
    x = jax.random.normal(k_x, (batch, input_size), jnp.float32)
    params = init_params(k_p, input_size, hidden_size, output_size)

    fwd = jax.jit(ae_forward)           # f32 compute for exact comparison
    h, out, vt_out = fwd(x, *params)
    jax.block_until_ready((h, out, vt_out))

    # Sanity check against pure-JAX reference.
    w_enc, b_enc, w_dec, b_dec, w_vt, b_vt = params
    h_ref = jnp.maximum(x @ w_enc + b_enc, 0.0)
    out_ref = jnp.maximum(h_ref @ w_dec + b_dec, 0.0)
    vt_ref = jnp.tanh(h_ref @ w_vt + b_vt)
    assert h.shape == (batch, hidden_size)
    assert out.shape == (batch, input_size)
    assert vt_out.shape == (batch, output_size)
    assert jnp.allclose(h, h_ref, atol=1e-5)
    assert jnp.allclose(out, out_ref, atol=1e-5)
    assert jnp.allclose(vt_out, vt_ref, atol=1e-5)

    print("KERNEL_OK")
</pallas_src>

<mosaic_0001>
module attributes {stable_mosaic.version = 11 : i64} {
  func.func @ae_kernel(%arg0: i32, %arg1: memref<8x128xf32, #tpu.memory_space<vmem>>, %arg2: memref<128x128xf32, #tpu.memory_space<vmem>>, %arg3: memref<1x128xf32, #tpu.memory_space<vmem>>, %arg4: memref<128x128xf32, #tpu.memory_space<vmem>>, %arg5: memref<1x128xf32, #tpu.memory_space<vmem>>, %arg6: memref<128x128xf32, #tpu.memory_space<vmem>>, %arg7: memref<1x128xf32, #tpu.memory_space<vmem>>, %arg8: memref<8x128xf32, #tpu.memory_space<vmem>>, %arg9: memref<8x128xf32, #tpu.memory_space<vmem>>, %arg10: memref<8x128xf32, #tpu.memory_space<vmem>>) attributes {dimension_semantics = [#tpu.dimension_semantics<parallel>], iteration_bounds = array<i64: 1>, scalar_prefetch = 0 : i64, scratch_operands = 0 : i64, tpu.core_type = #tpu.core_type<tc>, window_params = [{transform_indices = @transform_0, window_bounds = array<i64: 8, 128>}, {pipeline_mode = #tpu.pipeline_mode<synchronous>, transform_indices = @transform_1, window_bounds = array<i64: 128, 128>}, {pipeline_mode = #tpu.pipeline_mode<synchronous>, transform_indices = @transform_2, window_bounds = array<i64: 1, 128>}, {pipeline_mode = #tpu.pipeline_mode<synchronous>, transform_indices = @transform_3, window_bounds = array<i64: 128, 128>}, {pipeline_mode = #tpu.pipeline_mode<synchronous>, transform_indices = @transform_4, window_bounds = array<i64: 1, 128>}, {pipeline_mode = #tpu.pipeline_mode<synchronous>, transform_indices = @transform_5, window_bounds = array<i64: 128, 128>}, {pipeline_mode = #tpu.pipeline_mode<synchronous>, transform_indices = @transform_6, window_bounds = array<i64: 1, 128>}, {transform_indices = @transform_7, window_bounds = array<i64: 8, 128>}, {transform_indices = @transform_8, window_bounds = array<i64: 8, 128>}, {transform_indices = @transform_9, window_bounds = array<i64: 8, 128>}]} {
    %c0 = arith.constant 0 : index
    %c0_0 = arith.constant 0 : index
    %0 = vector.load %arg1[%c0, %c0_0] : memref<8x128xf32, #tpu.memory_space<vmem>>, vector<8x128xf32>
    %c0_1 = arith.constant 0 : index
    %c0_2 = arith.constant 0 : index
    %1 = vector.load %arg2[%c0_1, %c0_2] : memref<128x128xf32, #tpu.memory_space<vmem>>, vector<128x128xf32>
    %cst = arith.constant dense<0.000000e+00> : vector<8x128xf32>
    %2 = tpu.matmul %0, %1, %cst {dimension_numbers = #tpu.dot_dimension_numbers<[1], [0], [0], [1], [0, 0, 1, 1], [], []>} : vector<8x128xf32>, vector<128x128xf32>, vector<8x128xf32> -> vector<8x128xf32>
    %c0_3 = arith.constant 0 : index
    %c0_4 = arith.constant 0 : index
    %3 = vector.load %arg3[%c0_3, %c0_4] : memref<1x128xf32, #tpu.memory_space<vmem>>, vector<1x128xf32>
    %4 = vector.broadcast %3 : vector<1x128xf32> to vector<8x128xf32>
    %5 = arith.addf %2, %4 : vector<8x128xf32>
    %cst_5 = arith.constant 0.000000e+00 : f32
    %6 = vector.broadcast %cst_5 : f32 to vector<8x128xf32>
    %7 = arith.maximumf %5, %6 : vector<8x128xf32>
    %c0_6 = arith.constant 0 : index
    %c0_7 = arith.constant 0 : index
    %8 = vector.load %arg8[%c0_6, %c0_7] : memref<8x128xf32, #tpu.memory_space<vmem>>, vector<8x128xf32>
    tpu.vector_store %arg8[%c0_6, %c0_7], %7 {strides = array<i32>} : memref<8x128xf32, #tpu.memory_space<vmem>>, vector<8x128xf32>,
    %c0_8 = arith.constant 0 : index
    %c0_9 = arith.constant 0 : index
    %9 = vector.load %arg4[%c0_8, %c0_9] : memref<128x128xf32, #tpu.memory_space<vmem>>, vector<128x128xf32>
    %cst_10 = arith.constant dense<0.000000e+00> : vector<8x128xf32>
    %10 = tpu.matmul %7, %9, %cst_10 {dimension_numbers = #tpu.dot_dimension_numbers<[1], [0], [0], [1], [0, 0, 1, 1], [], []>} : vector<8x128xf32>, vector<128x128xf32>, vector<8x128xf32> -> vector<8x128xf32>
    %c0_11 = arith.constant 0 : index
    %c0_12 = arith.constant 0 : index
    %11 = vector.load %arg5[%c0_11, %c0_12] : memref<1x128xf32, #tpu.memory_space<vmem>>, vector<1x128xf32>
    %12 = vector.broadcast %11 : vector<1x128xf32> to vector<8x128xf32>
    %13 = arith.addf %10, %12 : vector<8x128xf32>
    %cst_13 = arith.constant 0.000000e+00 : f32
    %14 = vector.broadcast %cst_13 : f32 to vector<8x128xf32>
    %15 = arith.maximumf %13, %14 : vector<8x128xf32>
    %c0_14 = arith.constant 0 : index
    %c0_15 = arith.constant 0 : index
    %16 = vector.load %arg9[%c0_14, %c0_15] : memref<8x128xf32, #tpu.memory_space<vmem>>, vector<8x128xf32>
    tpu.vector_store %arg9[%c0_14, %c0_15], %15 {strides = array<i32>} : memref<8x128xf32, #tpu.memory_space<vmem>>, vector<8x128xf32>,
    %c0_16 = arith.constant 0 : index
    %c0_17 = arith.constant 0 : index
    %17 = vector.load %arg6[%c0_16, %c0_17] : memref<128x128xf32, #tpu.memory_space<vmem>>, vector<128x128xf32>
    %cst_18 = arith.constant dense<0.000000e+00> : vector<8x128xf32>
    %18 = tpu.matmul %7, %17, %cst_18 {dimension_numbers = #tpu.dot_dimension_numbers<[1], [0], [0], [1], [0, 0, 1, 1], [], []>} : vector<8x128xf32>, vector<128x128xf32>, vector<8x128xf32> -> vector<8x128xf32>
    %c0_19 = arith.constant 0 : index
    %c0_20 = arith.constant 0 : index
    %19 = vector.load %arg7[%c0_19, %c0_20] : memref<1x128xf32, #tpu.memory_space<vmem>>, vector<1x128xf32>
    %20 = vector.broadcast %19 : vector<1x128xf32> to vector<8x128xf32>
    %21 = arith.addf %18, %20 : vector<8x128xf32>
    %22 = math.tanh %21 : vector<8x128xf32>
    %c0_21 = arith.constant 0 : index
    %c0_22 = arith.constant 0 : index
    %23 = vector.load %arg10[%c0_21, %c0_22] : memref<8x128xf32, #tpu.memory_space<vmem>>, vector<8x128xf32>
    tpu.vector_store %arg10[%c0_21, %c0_22], %22 {strides = array<i32>} : memref<8x128xf32, #tpu.memory_space<vmem>>, vector<8x128xf32>,
    return
  }
  func.func @transform_0(%arg0: i32) -> (i32, i32) {
    %c0_i32 = arith.constant 0 : i32
    %c0_i32_0 = arith.constant 0 : i32
    return %arg0, %c0_i32 : i32, i32
  }
  func.func @transform_1(%arg0: i32) -> (i32, i32) {
    %c0_i32 = arith.constant 0 : i32
    %c0_i32_0 = arith.constant 0 : i32
    %c0_i32_1 = arith.constant 0 : i32
    return %c0_i32, %c0_i32_0 : i32, i32
  }
  func.func @transform_2(%arg0: i32) -> (i32, i32) {
    %c0_i32 = arith.constant 0 : i32
    %c0_i32_0 = arith.constant 0 : i32
    %c0_i32_1 = arith.constant 0 : i32
    return %c0_i32, %c0_i32_0 : i32, i32
  }
  func.func @transform_3(%arg0: i32) -> (i32, i32) {
    %c0_i32 = arith.constant 0 : i32
    %c0_i32_0 = arith.constant 0 : i32
    %c0_i32_1 = arith.constant 0 : i32
    return %c0_i32, %c0_i32_0 : i32, i32
  }
  func.func @transform_4(%arg0: i32) -> (i32, i32) {
    %c0_i32 = arith.constant 0 : i32
    %c0_i32_0 = arith.constant 0 : i32
    %c0_i32_1 = arith.constant 0 : i32
    return %c0_i32, %c0_i32_0 : i32, i32
  }
  func.func @transform_5(%arg0: i32) -> (i32, i32) {
    %c0_i32 = arith.constant 0 : i32
    %c0_i32_0 = arith.constant 0 : i32
    %c0_i32_1 = arith.constant 0 : i32
    return %c0_i32, %c0_i32_0 : i32, i32
  }
  func.func @transform_6(%arg0: i32) -> (i32, i32) {
    %c0_i32 = arith.constant 0 : i32
    %c0_i32_0 = arith.constant 0 : i32
    %c0_i32_1 = arith.constant 0 : i32
    return %c0_i32, %c0_i32_0 : i32, i32
  }
  func.func @transform_7(%arg0: i32) -> (i32, i32) {
    %c0_i32 = arith.constant 0 : i32
    %c0_i32_0 = arith.constant 0 : i32
    return %arg0, %c0_i32 : i32, i32
  }
  func.func @transform_8(%arg0: i32) -> (i32, i32) {
    %c0_i32 = arith.constant 0 : i32
    %c0_i32_0 = arith.constant 0 : i32
    return %arg0, %c0_i32 : i32, i32
  }
  func.func @transform_9(%arg0: i32) -> (i32, i32) {
    %c0_i32 = arith.constant 0 : i32
    %c0_i32_0 = arith.constant 0 : i32
    return %arg0, %c0_i32 : i32, i32
  }
}

</mosaic_0001>

<llo_original>
// kernel: ae_forward.1
$region0: #{ae_forward.1}
  #allocation0 [shape = 'u32[]', space=smem, size = 0x4, offset = 0x4, fixed_abs, tag = 'smem constant byte address 0x4 - core index']
  #allocation1 [shape = 'u32[72,128]{1,0:T(1,128)}', space=vmem, size = 0x9000, scoped, tag = 'internal scratch']
  %s0 = inlined_call_operand.vmem [shape: f32[8,128], index: 0, kind: input, shape index: {}]
  %s1 = inlined_call_operand.vmem [shape: f32[128,128], index: 1, kind: input, shape index: {}]
  %s2 = inlined_call_operand.vmem [shape: f32[1,128], index: 2, kind: input, shape index: {}]
  %s3 = inlined_call_operand.vmem [shape: f32[128,128], index: 3, kind: input, shape index: {}]
  %s4 = inlined_call_operand.vmem [shape: f32[1,128], index: 4, kind: input, shape index: {}]
  %s5 = inlined_call_operand.vmem [shape: f32[128,128], index: 5, kind: input, shape index: {}]
  %s6 = inlined_call_operand.vmem [shape: f32[1,128], index: 6, kind: input, shape index: {}]
  %s7 = inlined_call_operand.hbm [shape: f32[8,128], index: 7, kind: output, shape index: {0}]
  %s8 = inlined_call_operand.hbm [shape: f32[8,128], index: 8, kind: output, shape index: {1}]
  %s9 = inlined_call_operand.hbm [shape: f32[8,128], index: 9, kind: output, shape index: {2}]
  %10 = xla_tuple %s7, %s8, %s9
  %s11 = sld [smem:[#allocation0]]
  $region54: #{ae_forward.1} parent=0
    _
  %s13 = ssub.s32 1, %s11
  %s14 = scalar_select 0, %s13, %s11
  $region1: #{ae_forward.1} parent=0
    #allocation2 [shape = 'u8[4096]{0}', space=vmem, size = 0x1000, scoped, tag = 'output window, operand 0, single buffered']
    #allocation3 [shape = 's32[1]{0}', space=sflag, size = 0x4, scoped, tag = 'scoped memory for ae_forward.1']
    #allocation4 [shape = 'u8[4096]{0}', space=vmem, size = 0x1000, scoped, tag = 'output window, operand 1, single buffered']
    #allocation5 [shape = 's32[1]{0}', space=sflag, size = 0x4, scoped, tag = 'scoped memory for ae_forward.1']
    #allocation6 [shape = 'u8[4096]{0}', space=vmem, size = 0x1000, scoped, tag = 'output window, operand 2, single buffered']
    %15 = vsyncpa [#allocation3], 0
    %16 = vsyncpa [#allocation5], 0
    // Predicated region
    $region2: #{ae_forward.1} parent=1 // pred_check
      _
    $region3: #{ae_forward.1} parent=1 // pred_check_branch
      %18 = sbr.rel (0) target = $region5
    $region4: #{ae_forward.1} parent=1 // pred_region
      _
    $region5: #{ae_forward.1} parent=1 // pred_fallthru
      _
    // Predicated region
    $region6: #{ae_forward.1} parent=1 // pred_check
      _
    $region7: #{ae_forward.1} parent=1 // pred_check_branch
      %20 = sbr.rel (0) target = $region9
    $region8: #{ae_forward.1} parent=1 // pred_region
      _
    $region9: #{ae_forward.1} parent=1 // pred_fallthru
      _
    // Predicated region
    $region10: #{ae_forward.1} parent=1 // pred_check
      _
    $region11: #{ae_forward.1} parent=1 // pred_check_branch
      %22 = sbr.rel (0) target = $region13
    $region12: #{ae_forward.1} parent=1 // pred_region
      _
    $region13: #{ae_forward.1} parent=1 // pred_fallthru
      _
    // Predicated region
    $region14: #{ae_forward.1} parent=1 // pred_check
      _
    $region15: #{ae_forward.1} parent=1 // pred_check_branch
      %24 = sbr.rel (0) target = $region17
    $region16: #{ae_forward.1} parent=1 // pred_region
      _
    $region17: #{ae_forward.1} parent=1 // pred_fallthru
      _
    // Predicated region
    $region18: #{ae_forward.1} parent=1 // pred_check
      _
    $region19: #{ae_forward.1} parent=1 // pred_check_branch
      %26 = sbr.rel (0) target = $region21
    $region20: #{ae_forward.1} parent=1 // pred_region
      _
    $region21: #{ae_forward.1} parent=1 // pred_fallthru
      _
    // Predicated region
    $region22: #{ae_forward.1} parent=1 // pred_check
      _
    $region23: #{ae_forward.1} parent=1 // pred_check_branch
      %28 = sbr.rel (0) target = $region25
    $region24: #{ae_forward.1} parent=1 // pred_region
      _
    $region25: #{ae_forward.1} parent=1 // pred_fallthru
      _
    // Predicated region
    $region26: #{ae_forward.1} parent=1 // pred_check
      _
    $region27: #{ae_forward.1} parent=1 // pred_check_branch
      %30 = sbr.rel (0) target = $region29
    $region28: #{ae_forward.1} parent=1 // pred_region
      _
    $region29: #{ae_forward.1} parent=1 // pred_fallthru
      _
    %v31 = vld [vmem:[%s0] sm:$0xff]
    %v32 = vld [vmem:[%s1] sm:$0xff]
    %v33 = vld [vmem:[%s1 + $0x8] sm:$0xff]
    %v34 = vld [vmem:[%s1 + $0x10] sm:$0xff]
    %v35 = vld [vmem:[%s1 + $0x18] sm:$0xff]
    %v36 = vld [vmem:[%s1 + $0x20] sm:$0xff]
    %v37 = vld [vmem:[%s1 + $0x28] sm:$0xff]
    %v38 = vld [vmem:[%s1 + $0x30] sm:$0xff]
    %v39 = vld [vmem:[%s1 + $0x38] sm:$0xff]
    %v40 = vld [vmem:[%s1 + $0x40] sm:$0xff]
    %v41 = vld [vmem:[%s1 + $0x48] sm:$0xff]
    %v42 = vld [vmem:[%s1 + $0x50] sm:$0xff]
    %v43 = vld [vmem:[%s1 + $0x58] sm:$0xff]
    %v44 = vld [vmem:[%s1 + $0x60] sm:$0xff]
    %v45 = vld [vmem:[%s1 + $0x68] sm:$0xff]
    %v46 = vld [vmem:[%s1 + $0x70] sm:$0xff]
    %v47 = vld [vmem:[%s1 + $0x78] sm:$0xff]
    %v48 = vld [vmem:[%s2] sm:$0x1]
    %v50 = vperm.slane %v48, 0
    %52 = vmatpush.msra.mxu0 %v47
    %53 = vmatpush.msra.mxu0 %v46
    %54 = vmatpush.msra.mxu0 %v45
    %55 = vmatpush.msra.mxu0 %v44
    %56 = vmatpush.msra.mxu0 %v43
    %57 = vmatpush.msra.mxu0 %v42
    %58 = vmatpush.msra.mxu0 %v41
    %59 = vmatpush.msra.mxu0 %v40
    %60 = vmatpush.msra.mxu0 %v39
    %61 = vmatpush.msra.mxu0 %v38
    %62 = vmatpush.msra.mxu0 %v37
    %63 = vmatpush.msra.mxu0 %v36
    %64 = vmatpush.msra.mxu0 %v35
    %65 = vmatpush.msra.mxu0 %v34
    %66 = vmatpush.msra.mxu0 %v33
    %67 = vmatpush.msra.mxu0 %v32
    %68 = vmatmul.f32.gmra.mxu0 %v31
    %v69 = vpop.f32.mrf.mxu0
    %v70 = vadd.f32 %v50, %v69
    %71 = vdwg.mxu0
    %v72 = vmax.f32 %v70, 0.0
    %73 = vst [vmem:[#allocation2] sm:$0xff] %v72
    %v74 = vld [vmem:[%s3] sm:$0xff]
    %v75 = vld [vmem:[%s3 + $0x8] sm:$0xff]
    %v76 = vld [vmem:[%s3 + $0x10] sm:$0xff]
    %v77 = vld [vmem:[%s3 + $0x18] sm:$0xff]
    %v78 = vld [vmem:[%s3 + $0x20] sm:$0xff]
    %v79 = vld [vmem:[%s3 + $0x28] sm:$0xff]
    %v80 = vld [vmem:[%s3 + $0x30] sm:$0xff]
    %v81 = vld [vmem:[%s3 + $0x38] sm:$0xff]
    %v82 = vld [vmem:[%s3 + $0x40] sm:$0xff]
    %v83 = vld [vmem:[%s3 + $0x48] sm:$0xff]
    %v84 = vld [vmem:[%s3 + $0x50] sm:$0xff]
    %v85 = vld [vmem:[%s3 + $0x58] sm:$0xff]
    %v86 = vld [vmem:[%s3 + $0x60] sm:$0xff]
    %v87 = vld [vmem:[%s3 + $0x68] sm:$0xff]
    %v88 = vld [vmem:[%s3 + $0x70] sm:$0xff]
    %v89 = vld [vmem:[%s3 + $0x78] sm:$0xff]
    %v90 = vld [vmem:[%s4] sm:$0x1]
    %v92 = vperm.slane %v90, 0
    %94 = vmatpush.msra.mxu0 %v89
    %95 = vmatpush.msra.mxu0 %v88
    %96 = vmatpush.msra.mxu0 %v87
    %97 = vmatpush.msra.mxu0 %v86
    %98 = vmatpush.msra.mxu0 %v85
    %99 = vmatpush.msra.mxu0 %v84
    %100 = vmatpush.msra.mxu0 %v83
    %101 = vmatpush.msra.mxu0 %v82
    %102 = vmatpush.msra.mxu0 %v81
    %103 = vmatpush.msra.mxu0 %v80
    %104 = vmatpush.msra.mxu0 %v79
    %105 = vmatpush.msra.mxu0 %v78
    %106 = vmatpush.msra.mxu0 %v77
    %107 = vmatpush.msra.mxu0 %v76
    %108 = vmatpush.msra.mxu0 %v75
    %109 = vmatpush.msra.mxu0 %v74
    %110 = vmatmul.f32.gmra.mxu0 %v72
    %v111 = vpop.f32.mrf.mxu0
    %v112 = vadd.f32 %v92, %v111
    %113 = vdwg.mxu0
    %v114 = vmax.f32 %v112, 0.0
    %115 = vst [vmem:[#allocation4] sm:$0xff] %v114
    %v116 = vld [vmem:[%s5] sm:$0xff]
    %v117 = vld [vmem:[%s5 + $0x8] sm:$0xff]
    %v118 = vld [vmem:[%s5 + $0x10] sm:$0xff]
    %v119 = vld [vmem:[%s5 + $0x18] sm:$0xff]
    %v120 = vld [vmem:[%s5 + $0x20] sm:$0xff]
    %v121 = vld [vmem:[%s5 + $0x28] sm:$0xff]
    %v122 = vld [vmem:[%s5 + $0x30] sm:$0xff]
    %v123 = vld [vmem:[%s5 + $0x38] sm:$0xff]
    %v124 = vld [vmem:[%s5 + $0x40] sm:$0xff]
    %v125 = vld [vmem:[%s5 + $0x48] sm:$0xff]
    %v126 = vld [vmem:[%s5 + $0x50] sm:$0xff]
    %v127 = vld [vmem:[%s5 + $0x58] sm:$0xff]
    %v128 = vld [vmem:[%s5 + $0x60] sm:$0xff]
    %v129 = vld [vmem:[%s5 + $0x68] sm:$0xff]
    %v130 = vld [vmem:[%s5 + $0x70] sm:$0xff]
    %v131 = vld [vmem:[%s5 + $0x78] sm:$0xff]
    %v132 = vld [vmem:[%s6] sm:$0x1]
    %v134 = vperm.slane %v132, 0
    %136 = vmatpush.msra.mxu0 %v131
    %137 = vmatpush.msra.mxu0 %v130
    %138 = vmatpush.msra.mxu0 %v129
    %139 = vmatpush.msra.mxu0 %v128
    %140 = vmatpush.msra.mxu0 %v127
    %141 = vmatpush.msra.mxu0 %v126
    %142 = vmatpush.msra.mxu0 %v125
    %143 = vmatpush.msra.mxu0 %v124
    %144 = vmatpush.msra.mxu0 %v123
    %145 = vmatpush.msra.mxu0 %v122
    %146 = vmatpush.msra.mxu0 %v121
    %147 = vmatpush.msra.mxu0 %v120
    %148 = vmatpush.msra.mxu0 %v119
    %149 = vmatpush.msra.mxu0 %v118
    %150 = vmatpush.msra.mxu0 %v117
    %151 = vmatpush.msra.mxu0 %v116
    %152 = vmatmul.f32.gmra.mxu0 %v72
    %v153 = vpop.f32.mrf.mxu0
    %v154 = vadd.f32 %v134, %v153
    %155 = vdwg.mxu0
    %v156 = vtanh.pop %v154
    %157 = vst [vmem:[#allocation6] sm:$0xff] %v156
    // Predicated region
    $region30: #{ae_forward.1} parent=1 // pred_check
      _
    $region31: #{ae_forward.1} parent=1 // pred_check_branch
      %159 = sbr.rel (0) target = $region33
    $region32: #{ae_forward.1} parent=1 // pred_region
      %161 = vsyncadd [#allocation3], 0
      %s163 = sshll.u32 [#allocation2], 4
      %s164 = int_to_ptr.vmem [resolvable:$true] %s163
      %s165 = sshll.u32 %s7, 4
      %s166 = int_to_ptr.hbm [resolvable:$true] %s165
      %168 = dma.vmem_to_hbm [thread:$0]  %s164, 128, %s166, [#allocation3]
    $region33: #{ae_forward.1} parent=1 // pred_fallthru
      _
    // Predicated region
    $region34: #{ae_forward.1} parent=1 // pred_check
      _
    $region35: #{ae_forward.1} parent=1 // pred_check_branch
      %170 = sbr.rel (0) target = $region37
    $region36: #{ae_forward.1} parent=1 // pred_region
      %172 = vsyncadd [#allocation5], 0
      %s174 = sshll.u32 [#allocation4], 4
      %s175 = int_to_ptr.vmem [resolvable:$true] %s174
      %s176 = sshll.u32 %s8, 4
      %s177 = int_to_ptr.hbm [resolvable:$true] %s176
      %179 = dma.vmem_to_hbm [thread:$0]  %s175, 128, %s177, [#allocation5]
    $region37: #{ae_forward.1} parent=1 // pred_fallthru
      _
    // Predicated region
    $region38: #{ae_forward.1} parent=1 // pred_check
      _
    $region39: #{ae_forward.1} parent=1 // pred_check_branch
      %181 = sbr.rel (0) target = $region41
    $region40: #{ae_forward.1} parent=1 // pred_region
      %183 = vsyncadd [#allocation5], 0
      %s185 = sshll.u32 [#allocation6], 4
      %s186 = int_to_ptr.vmem [resolvable:$true] %s185
      %s187 = sshll.u32 %s9, 4
      %s188 = int_to_ptr.hbm [resolvable:$true] %s187
      %190 = dma.vmem_to_hbm [thread:$0]  %s186, 128, %s188, [#allocation5]
    $region41: #{ae_forward.1} parent=1 // pred_fallthru
      _
    // Predicated region
    $region42: #{ae_forward.1} parent=1 // pred_check
      _
    $region43: #{ae_forward.1} parent=1 // pred_check_branch
      %192 = sbr.rel (0) target = $region45
    $region44: #{ae_forward.1} parent=1 // pred_region
      %194 = dma.done [#allocation3], 128
    $region45: #{ae_forward.1} parent=1 // pred_fallthru
      _
    // Predicated region
    $region46: #{ae_forward.1} parent=1 // pred_check
      _
    $region47: #{ae_forward.1} parent=1 // pred_check_branch
      %196 = sbr.rel (0) target = $region49
    $region48: #{ae_forward.1} parent=1 // pred_region
      %198 = dma.done [#allocation5], 128
    $region49: #{ae_forward.1} parent=1 // pred_fallthru
      _
    // Predicated region
    $region50: #{ae_forward.1} parent=1 // pred_check
      _
    $region51: #{ae_forward.1} parent=1 // pred_check_branch
      %200 = sbr.rel (0) target = $region53
    $region52: #{ae_forward.1} parent=1 // pred_region
      %202 = dma.done [#allocation5], 128
    $region53: #{ae_forward.1} parent=1 // pred_fallthru
      _
    %203 = vsyncpa [#allocation3], 1
    %204 = vsyncpa [#allocation5], 1

</llo_original>
